<compile_context>
chip_gen: v7x
topology: tpu7x:2x2x1
jax: 0.10.0
libtpu: 0.0.40
codegen_flags: <defaults>
</compile_context>

<pallas_src>
import jax
import jax.numpy as jnp
from jax.experimental import pallas as pl
from jax.experimental.pallas import tpu as pltpu


def _tv_kernel(a_ref, gy_ref, gx_ref):
    # a_ref:  (TR, H, W)     block of spatial slabs
    # gy_ref: (TR, H-1, W)   vertical-gradient output block
    # gx_ref: (TR, H, W-1)   horizontal-gradient output block
    _, H, W = a_ref.shape
    # Ref slices (views -> offset loads), not value slices of one full load.
    gx_ref[...] = jnp.abs(
        a_ref[:, :, pl.ds(0, W - 1)] - a_ref[:, :, pl.ds(1, W - 1)]
    )
    gy_ref[...] = jnp.abs(
        a_ref[:, pl.ds(0, H - 1), :] - a_ref[:, pl.ds(1, H - 1), :]
    )


def _round_up(x, m):
    return ((x + m - 1) // m) * m


def _tpu_defaults():
    """(vmem_capacity_bytes, assumed TensorCores per chip)."""
    vmem_capacity = 128 * 1024 * 1024  # v5e / v6e
    try:
        info = pltpu.get_tpu_info()
        vmem_capacity = int(getattr(info, "vmem_capacity_bytes", vmem_capacity))
    except Exception:
        pass
    # v7x exposes 64 MiB VMEM per TensorCore and has 2 TCs/chip;
    # v5e/v6e expose 128 MiB and a single TC.
    num_cores = 2 if vmem_capacity <= 64 * 1024 * 1024 else 1
    return vmem_capacity, num_cores


def _pick_tr(R, H, W, itemsize, vmem_budget_bytes, min_steps):
    """Rows per grid step, sized from the VMEM-padded working set AND a
    minimum grid-step count (so double-buffering has something to overlap)."""

    def padded_bytes(h, w):
        # VMEM layout pads second-minor to a multiple of 8 sublanes and the
        # minor dim to a multiple of 128 lanes.
        return _round_up(h, 8) * _round_up(w, 128) * itemsize

    # One row of each block (input + 2 outputs), double-buffered.
    per_row = 2 * (padded_bytes(H, W) + padded_bytes(H - 1, W)
                   + padded_bytes(H, W - 1))
    vmem_cap = max(1, vmem_budget_bytes // per_row)

    # Cap tr so the grid has at least `min_steps` steps (or R steps if R is
    # tiny): grid = cdiv(R, tr) >= min_steps whenever tr <= R // min_steps.
    eff_min_steps = max(1, min(min_steps, R))
    steps_cap = max(1, R // eff_min_steps)

    target = max(1, min(vmem_cap, steps_cap, R))
    # Prefer a TR that divides R exactly (no partial final tile).
    for tr in range(target, max(1, target // 2) - 1, -1):
        if R % tr == 0:
            return tr
    return target  # accept one clamped boundary block on the last step


def tv_loss(a, *, vmem_budget_bytes=10 * 1024 * 1024, steps_per_core=4,
            rows_per_step=None):
    """Pallas implementation of TV_Loss.forward.

    Args:
      a: jnp.ndarray of shape (N, C, D, H, W).
      vmem_budget_bytes: cap on the double-buffered, VMEM-padded working set.
      steps_per_core: minimum grid steps per TensorCore (pipelining depth).
      rows_per_step: optional override of the rows-per-step tile (testing).
    Returns:
      (gradient_a_y, gradient_a_x) with shapes
      (N, C, D, H-1, W) and (N, C, D, H, W-1).
    """
    N, C, D, H, W = a.shape

    # Degenerate spatial extents -> zero-size outputs; no kernel needed.
    if H < 2 or W < 2:
        gy = jnp.abs(a[:, :, :, :-1, :] - a[:, :, :, 1:, :])
        gx = jnp.abs(a[:, :, :, :, :-1] - a[:, :, :, :, 1:])
        return gy, gx

    R = N * C * D
    a_flat = a.reshape(R, H, W)  # metadata-only reshape (contiguous)
    itemsize = jnp.dtype(a.dtype).itemsize

    vmem_capacity, num_cores = _tpu_defaults()
    min_steps = steps_per_core * num_cores

    if rows_per_step is None:
        tr = _pick_tr(R, H, W, itemsize, vmem_budget_bytes, min_steps)
    else:
        tr = max(1, min(int(rows_per_step), R))
    grid = (pl.cdiv(R, tr),)

    # Scoped VMEM limit: <= half of physical VMEM on every generation
    # (32 MiB on v7x's 64 MiB, 32 MiB on v5e/v6e's 128 MiB), with >3x
    # headroom over the ~10 MiB working set for Pallas internal scratch.
    vmem_limit = int(min(32 * 1024 * 1024, vmem_capacity // 2))

    # Advisory cost for XLA scheduling around this bandwidth-bound kernel.
    flops = 2 * R * ((H - 1) * W + H * (W - 1))  # sub + abs per output element
    bytes_accessed = itemsize * R * (H * W + (H - 1) * W + H * (W - 1))

    gy_flat, gx_flat = pl.pallas_call(
        _tv_kernel,
        out_shape=(
            jax.ShapeDtypeStruct((R, H - 1, W), a.dtype),
            jax.ShapeDtypeStruct((R, H, W - 1), a.dtype),
        ),
        grid_spec=pl.GridSpec(
            grid=grid,
            in_specs=[
                # Last two block dims equal the full array dims -> no (8,128)
                # divisibility requirement even for small H / W.
                pl.BlockSpec((tr, H, W), lambda r: (r, 0, 0)),
            ],
            out_specs=[
                pl.BlockSpec((tr, H - 1, W), lambda r: (r, 0, 0)),
                pl.BlockSpec((tr, H, W - 1), lambda r: (r, 0, 0)),
            ],
        ),
        compiler_params=pltpu.CompilerParams(
            dimension_semantics=("parallel",),
            vmem_limit_bytes=vmem_limit,
        ),
        cost_estimate=pl.CostEstimate(
            flops=flops, transcendentals=0, bytes_accessed=bytes_accessed
        ),
    )(a_flat)

    gradient_a_y = gy_flat.reshape(N, C, D, H - 1, W)
    gradient_a_x = gx_flat.reshape(N, C, D, H, W - 1)
    return gradient_a_y, gradient_a_x


def tv_loss_ref(a):
    # Pure-JAX reference mirroring the PyTorch module exactly.
    gradient_a_x = jnp.abs(a[:, :, :, :, :-1] - a[:, :, :, :, 1:])
    gradient_a_y = jnp.abs(a[:, :, :, :-1, :] - a[:, :, :, 1:, :])
    return gradient_a_y, gradient_a_x


if __name__ == "__main__":
    key = jax.random.PRNGKey(0)
    # Small 5-D input consistent with the module's a[:, :, :, h, w] indexing.
    a = jax.random.normal(key, (2, 3, 4, 16, 16), dtype=jnp.float32)

    gy_ref, gx_ref = tv_loss_ref(a)

    # Default (heuristic tiling) path.
    gy, gx = tv_loss(a)
    gy, gx = jax.block_until_ready((gy, gx))
    assert gy.shape == (2, 3, 4, 15, 16), gy.shape
    assert gx.shape == (2, 3, 4, 16, 15), gx.shape
    assert jnp.allclose(gy, gy_ref, atol=1e-6, rtol=1e-6)
    assert jnp.allclose(gx, gx_ref, atol=1e-6, rtol=1e-6)

    # Partial-final-block path: R = 2*3*4 = 24, tr = 5 -> grid of 5 steps,
    # last block covers only 4 real rows (exercises clamped boundary DMA).
    gy2, gx2 = tv_loss(a, rows_per_step=5)
    gy2, gx2 = jax.block_until_ready((gy2, gx2))
    assert jnp.allclose(gy2, gy_ref, atol=1e-6, rtol=1e-6)
    assert jnp.allclose(gx2, gx_ref, atol=1e-6, rtol=1e-6)

    print("KERNEL_OK")
</pallas_src>

<mosaic_0001>
module attributes {stable_mosaic.version = 11 : i64} {
  func.func @_tv_kernel(%arg0: i32, %arg1: memref<6x16x16xf32, #tpu.memory_space<vmem>>, %arg2: memref<6x15x16xf32, #tpu.memory_space<vmem>>, %arg3: memref<6x16x15xf32, #tpu.memory_space<vmem>>) attributes {dimension_semantics = [#tpu.dimension_semantics<parallel>], iteration_bounds = array<i64: 4>, scalar_prefetch = 0 : i64, scratch_operands = 0 : i64, tpu.core_type = #tpu.core_type<tc>, window_params = [{transform_indices = @transform_0, window_bounds = array<i64: 6, 16, 16>}, {transform_indices = @transform_1, window_bounds = array<i64: 6, 15, 16>}, {transform_indices = @transform_2, window_bounds = array<i64: 6, 16, 15>}]} {
    %c0 = arith.constant 0 : index
    %c0_0 = arith.constant 0 : index
    %c0_1 = arith.constant 0 : index
    %0 = vector.load %arg1[%c0, %c0_0, %c0_1] : memref<6x16x16xf32, #tpu.memory_space<vmem>>, vector<6x16x15xf32>
    %c0_2 = arith.constant 0 : index
    %c0_3 = arith.constant 0 : index
    %c1 = arith.constant 1 : index
    %1 = vector.load %arg1[%c0_2, %c0_3, %c1] : memref<6x16x16xf32, #tpu.memory_space<vmem>>, vector<6x16x15xf32>
    %2 = arith.subf %0, %1 : vector<6x16x15xf32>
    %3 = math.absf %2 : vector<6x16x15xf32>
    %c0_4 = arith.constant 0 : index
    %c0_5 = arith.constant 0 : index
    %c0_6 = arith.constant 0 : index
    %4 = vector.load %arg3[%c0_4, %c0_5, %c0_6] : memref<6x16x15xf32, #tpu.memory_space<vmem>>, vector<6x16x15xf32>
    tpu.vector_store %arg3[%c0_4, %c0_5, %c0_6], %3 {strides = array<i32>} : memref<6x16x15xf32, #tpu.memory_space<vmem>>, vector<6x16x15xf32>,
    %c0_7 = arith.constant 0 : index
    %c0_8 = arith.constant 0 : index
    %c0_9 = arith.constant 0 : index
    %5 = vector.load %arg1[%c0_7, %c0_8, %c0_9] : memref<6x16x16xf32, #tpu.memory_space<vmem>>, vector<6x15x16xf32>
    %c0_10 = arith.constant 0 : index
    %c1_11 = arith.constant 1 : index
    %c0_12 = arith.constant 0 : index
    %6 = vector.load %arg1[%c0_10, %c1_11, %c0_12] : memref<6x16x16xf32, #tpu.memory_space<vmem>>, vector<6x15x16xf32>
    %7 = arith.subf %5, %6 : vector<6x15x16xf32>
    %8 = math.absf %7 : vector<6x15x16xf32>
    %c0_13 = arith.constant 0 : index
    %c0_14 = arith.constant 0 : index
    %c0_15 = arith.constant 0 : index
    %9 = vector.load %arg2[%c0_13, %c0_14, %c0_15] : memref<6x15x16xf32, #tpu.memory_space<vmem>>, vector<6x15x16xf32>
    tpu.vector_store %arg2[%c0_13, %c0_14, %c0_15], %8 {strides = array<i32>} : memref<6x15x16xf32, #tpu.memory_space<vmem>>, vector<6x15x16xf32>,
    return
  }
  func.func @transform_0(%arg0: i32) -> (i32, i32, i32) {
    %c0_i32 = arith.constant 0 : i32
    %c0_i32_0 = arith.constant 0 : i32
    %c0_i32_1 = arith.constant 0 : i32
    return %arg0, %c0_i32, %c0_i32_0 : i32, i32, i32
  }
  func.func @transform_1(%arg0: i32) -> (i32, i32, i32) {
    %c0_i32 = arith.constant 0 : i32
    %c0_i32_0 = arith.constant 0 : i32
    %c0_i32_1 = arith.constant 0 : i32
    return %arg0, %c0_i32, %c0_i32_0 : i32, i32, i32
  }
  func.func @transform_2(%arg0: i32) -> (i32, i32, i32) {
    %c0_i32 = arith.constant 0 : i32
    %c0_i32_0 = arith.constant 0 : i32
    %c0_i32_1 = arith.constant 0 : i32
    return %arg0, %c0_i32, %c0_i32_0 : i32, i32, i32
  }
}

</mosaic_0001>

<llo_original>
// kernel: tpu_custom_call.1
$region0: #{tpu_custom_call.1}
  #allocation0 [shape = 'u32[]', space=smem, size = 0x4, offset = 0x4, fixed_abs, tag = 'smem constant byte address 0x4 - core index']
  #allocation1 [shape = 'u32[144,128]{1,0:T(1,128)}', space=vmem, size = 0x12000, scoped, tag = 'internal scratch']
  %s0 = inlined_call_operand.vmem [shape: f32[24,16,16], index: 0, kind: input, shape index: {}]
  %s1 = inlined_call_operand.vmem [shape: f32[24,15,16], index: 1, kind: output, shape index: {0}]
  %s2 = inlined_call_operand.vmem [shape: f32[24,16,15], index: 2, kind: output, shape index: {1}]
  %3 = xla_tuple %s1, %s2
  %s4 = sld [smem:[#allocation0]]
  $region45: #{tpu_custom_call.1} parent=0
    _
  %s6 = ssub.s32 1, %s4
  %s7 = scalar_select 0, %s6, %s4
  loop: start=0, step=1, limit=6
  $region2: #{tpu_custom_call.1} parent=0 // loop_pre_header
    _
  $region3: #{tpu_custom_call.1} parent=0 // loop_header
    %s9 = sphi 0, %s13
    %p10 = scmp.ge.s32.totalorder %s9, 6
    %s19 = sphi 0, %s21
    %s22 = sphi 0, %s19
    %s23 = sphi 0, %s22
    %s39 = sphi 0, %s23
    %s45 = sphi 0, %s47
    %s48 = sphi 0, %s45
    %s49 = sphi 0, %s48
    %s65 = sphi 0, %s49
    %s71 = sphi 0, %s73
    %s74 = sphi 0, %s71
    %s75 = sphi 0, %s74
    %s91 = sphi 0, %s75
  $region4: #{tpu_custom_call.1} parent=0 // loop_header_branch
    %12 = sbr.rel (%p10) target = $region8
  $region5: #{tpu_custom_call.1} parent=0 // loop_body
    %s14 = ssub.s32 %s9, 1
    %s15 = ssub.s32 %s9, 2
    %s16 = sadd.s32 %s9, 1
    %s17 = ssub.s32 %s9, %s16
    %p18 = scmp.eq.s32.totalorder %s17, 0
    %s20 = sadd.s32 %s19, 1
    %s21 = scalar_select %p18, %s19, %s20
    %p24 = pneg %p18
    %p25 = scmp.eq.s32.totalorder %s9, 3
    %p26 = por %p24, %p25
    %p27 = scmp.ne.s32.totalorder %s19, %s22
    %p28 = scmp.eq.s32.totalorder %s9, 0
    %p29 = por %p27, %p28
    %p30 = scmp.ne.s32.totalorder %s19, %s22
    %p31 = scmp.eq.s32.totalorder %s14, 3
    %p32 = por %p30, %p31
    %p33 = scmp.ne.s32.totalorder %s22, %s23
    %p34 = scmp.eq.s32.totalorder %s14, 0
    %p35 = por %p33, %p34
    %p36 = scmp.ne.s32.totalorder %s22, %s23
    %p37 = scmp.eq.s32.totalorder %s15, 3
    %p38 = por %p36, %p37
    %p40 = scmp.ne.s32.totalorder %s23, %s39
    %p41 = scmp.eq.s32.totalorder %s15, 0
    %p42 = por %p40, %p41
    %s43 = ssub.s32 %s9, %s16
    %p44 = scmp.eq.s32.totalorder %s43, 0
    %s46 = sadd.s32 %s45, 1
    %s47 = scalar_select %p44, %s45, %s46
    %p50 = pneg %p44
    %p51 = scmp.eq.s32.totalorder %s9, 3
    %p52 = por %p50, %p51
    %p53 = scmp.ne.s32.totalorder %s45, %s48
    %p54 = scmp.eq.s32.totalorder %s9, 0
    %p55 = por %p53, %p54
    %p56 = scmp.ne.s32.totalorder %s45, %s48
    %p57 = scmp.eq.s32.totalorder %s14, 3
    %p58 = por %p56, %p57
    %p59 = scmp.ne.s32.totalorder %s48, %s49
    %p60 = scmp.eq.s32.totalorder %s14, 0
    %p61 = por %p59, %p60
    %p62 = scmp.ne.s32.totalorder %s48, %s49
    %p63 = scmp.eq.s32.totalorder %s15, 3
    %p64 = por %p62, %p63
    %p66 = scmp.ne.s32.totalorder %s49, %s65
    %p67 = scmp.eq.s32.totalorder %s15, 0
    %p68 = por %p66, %p67
    %s69 = ssub.s32 %s9, %s16
    %p70 = scmp.eq.s32.totalorder %s69, 0
    %s72 = sadd.s32 %s71, 1
    %s73 = scalar_select %p70, %s71, %s72
    %p76 = pneg %p70
    %p77 = scmp.eq.s32.totalorder %s9, 3
    %p78 = por %p76, %p77
    %p79 = scmp.ne.s32.totalorder %s71, %s74
    %p80 = scmp.eq.s32.totalorder %s9, 0
    %p81 = por %p79, %p80
    %p82 = scmp.ne.s32.totalorder %s71, %s74
    %p83 = scmp.eq.s32.totalorder %s14, 3
    %p84 = por %p82, %p83
    %p85 = scmp.ne.s32.totalorder %s74, %s75
    %p86 = scmp.eq.s32.totalorder %s14, 0
    %p87 = por %p85, %p86
    %p88 = scmp.ne.s32.totalorder %s74, %s75
    %p89 = scmp.eq.s32.totalorder %s15, 3
    %p90 = por %p88, %p89
    %p92 = scmp.ne.s32.totalorder %s75, %s91
    %p93 = scmp.eq.s32.totalorder %s15, 0
    %p94 = por %p92, %p93
    %p95 = scmp.le.s32.totalorder 1, %s9
    %p96 = scmp.lt.s32.totalorder %s9, 5
    %p97 = pnand %p95, %p96
    %p98 = pneg %p97
    // Predicated region
    $region9: #{tpu_custom_call.1} parent=5 // pred_check
      _
    $region10: #{tpu_custom_call.1} parent=5 // pred_check_branch
      %100 = sbr.rel (%p97) target = $region12
    $region11: #{tpu_custom_call.1} parent=5 // pred_region
      %s101 = ssub.s32 %s9, 1
    $region12: #{tpu_custom_call.1} parent=5 // pred_fallthru
      _
    %p102 = scmp.lt.s32.totalorder %s9, 4
    // Predicated region
    $region13: #{tpu_custom_call.1} parent=5 // pred_check
      %p103 = pneg %p102
    $region14: #{tpu_custom_call.1} parent=5 // pred_check_branch
      %105 = sbr.rel (%p103) target = $region16
    $region15: #{tpu_custom_call.1} parent=5 // pred_region
      // Predicated region
      $region17: #{tpu_custom_call.1} parent=15 // pred_check
        %p106 = pneg %p29
      $region18: #{tpu_custom_call.1} parent=15 // pred_check_branch
        %108 = sbr.rel (%p106) target = $region20
      $region19: #{tpu_custom_call.1} parent=15 // pred_region
        %s109 = smul.u32 6, %s9
        %p110 = scmp.lt.s32.totalorder %s109, 23
        %s111 = scalar_select %p110, %s109, 23
        %s112 = smul.addr %s111, 2
        %s113 = smul.addr %s112, 8
        %s114 = scalar_lea.vmem %s0, %s113
        %s115 = smul.u32 6, %s9
      $region20: #{tpu_custom_call.1} parent=15 // pred_fallthru
        _
    $region16: #{tpu_custom_call.1} parent=5 // pred_fallthru
      _
    %p116 = scmp.le.s32.totalorder 1, %s9
    %p117 = scmp.lt.s32.totalorder %s9, 5
    %p118 = pnand %p116, %p117
    %p119 = pneg %p118
    // Predicated region
    $region21: #{tpu_custom_call.1} parent=5 // pred_check
      _
    $region22: #{tpu_custom_call.1} parent=5 // pred_check_branch
      %121 = sbr.rel (%p118) target = $region24
    $region23: #{tpu_custom_call.1} parent=5 // pred_region
      %s122 = ssub.s32 %s9, 1
      %s123 = smul.u32 6, %s14
      %p124 = scmp.lt.s32.totalorder %s123, 23
      %s125 = scalar_select %p124, %s123, 23
      %s126 = smul.addr %s125, 2
      %s127 = smul.addr %s126, 8
      %s128 = scalar_lea.vmem %s0, %s127
      %p129 = pneg %p35
      %p130 = pneg %p32
      %p131 = pneg %p61
      %p132 = pneg %p58
      %s133 = smul.u32 6, %s14
      %p134 = scmp.lt.s32.totalorder %s133, 23
      %s135 = scalar_select %p134, %s133, 23
      %s136 = smul.addr %s135, 2
      %s137 = smul.addr %s136, 8
      %s138 = scalar_lea.vmem %s1, %s137
      %p139 = pneg %p87
      %p140 = pneg %p84
      %s141 = smul.u32 6, %s14
      %p142 = scmp.lt.s32.totalorder %s141, 23
      %s143 = scalar_select %p142, %s141, 23
      %s144 = smul.addr %s143, 2
      %s145 = smul.addr %s144, 8
      %s146 = scalar_lea.vmem %s2, %s145
      %s147 = smul.u32 6, %s14
      %p148 = scmp.lt.s32.totalorder %s147, 23
      %s149 = scalar_select %p148, %s147, 23
      %s150 = smul.addr %s149, 2
      %s151 = smul.addr %s150, 8
      %s152 = scalar_lea.vmem %s0, %s151
      %s153 = smul.u32 6, %s14
      %s154 = smul.u32 6, %s14
      %p155 = scmp.lt.s32.totalorder %s154, 23
      %s156 = scalar_select %p155, %s154, 23
      %s157 = smul.addr %s156, 2
      %s158 = smul.addr %s157, 8
      %s159 = scalar_lea.vmem %s1, %s158
      %s160 = smul.u32 6, %s14
      %s161 = smul.u32 6, %s14
      %p162 = scmp.lt.s32.totalorder %s161, 23
      %s163 = scalar_select %p162, %s161, 23
      %s164 = smul.addr %s163, 2
      %s165 = smul.addr %s164, 8
      %s166 = scalar_lea.vmem %s2, %s165
      %s167 = smul.u32 6, %s14
      %v168 = vld [vmem:[%s152] sm:$0xff]
      %v169 = vld [vmem:[%s152 + $0x8] sm:$0xff]
      %v170 = vld [vmem:[%s152 + $0x10] sm:$0xff]
      %v171 = vld [vmem:[%s152 + $0x18] sm:$0xff]
      %v172 = vld [vmem:[%s152 + $0x20] sm:$0xff]
      %v173 = vld [vmem:[%s152 + $0x28] sm:$0xff]
      %v174 = vld [vmem:[%s152 + $0x30] sm:$0xff]
      %v175 = vld [vmem:[%s152 + $0x38] sm:$0xff]
      %v176 = vld [vmem:[%s152 + $0x40] sm:$0xff]
      %v177 = vld [vmem:[%s152 + $0x48] sm:$0xff]
      %v178 = vld [vmem:[%s152 + $0x50] sm:$0xff]
      %v179 = vld [vmem:[%s152 + $0x58] sm:$0xff]
      %192 = vrot.lane.b32.xlu0 %v168, 127
      %v193 = vpop.permute.xlu0 %192
      %194 = vrot.lane.b32.xlu0 %v169, 127
      %v195 = vpop.permute.xlu0 %194
      %196 = vrot.lane.b32.xlu0 %v170, 127
      %v197 = vpop.permute.xlu0 %196
      %198 = vrot.lane.b32.xlu0 %v171, 127
      %v199 = vpop.permute.xlu0 %198
      %200 = vrot.lane.b32.xlu0 %v172, 127
      %v201 = vpop.permute.xlu0 %200
      %202 = vrot.lane.b32.xlu0 %v173, 127
      %v203 = vpop.permute.xlu0 %202
      %204 = vrot.lane.b32.xlu0 %v174, 127
      %v205 = vpop.permute.xlu0 %204
      %206 = vrot.lane.b32.xlu0 %v175, 127
      %v207 = vpop.permute.xlu0 %206
      %208 = vrot.lane.b32.xlu0 %v176, 127
      %v209 = vpop.permute.xlu0 %208
      %210 = vrot.lane.b32.xlu0 %v177, 127
      %v211 = vpop.permute.xlu0 %210
      %212 = vrot.lane.b32.xlu0 %v178, 127
      %v213 = vpop.permute.xlu0 %212
      %214 = vrot.lane.b32.xlu0 %v179, 127
      %v215 = vpop.permute.xlu0 %214
      %v228 = vsub.f32 %v168, %v193
      %v229 = vsub.f32 %v169, %v195
      %v230 = vsub.f32 %v170, %v197
      %v231 = vsub.f32 %v171, %v199
      %v232 = vsub.f32 %v172, %v201
      %v233 = vsub.f32 %v173, %v203
      %v234 = vsub.f32 %v174, %v205
      %v235 = vsub.f32 %v175, %v207
      %v236 = vsub.f32 %v176, %v209
      %v237 = vsub.f32 %v177, %v211
      %v238 = vsub.f32 %v178, %v213
      %v239 = vsub.f32 %v179, %v215
      %v240 = vand.u32 2147483647, %v228
      %v241 = vand.u32 2147483647, %v229
      %v242 = vand.u32 2147483647, %v230
      %v243 = vand.u32 2147483647, %v231
      %v244 = vand.u32 2147483647, %v232
      %v245 = vand.u32 2147483647, %v233
      %v246 = vand.u32 2147483647, %v234
      %v247 = vand.u32 2147483647, %v235
      %v248 = vand.u32 2147483647, %v236
      %v249 = vand.u32 2147483647, %v237
      %v250 = vand.u32 2147483647, %v238
      %v251 = vand.u32 2147483647, %v239
      %vm252 = vcmask 121856
      %253 = vst.msk [vmem:[%s166] sm:$0xff] %vm252, %v240
      %254 = vst.msk [vmem:[%s166 + $0x8] sm:$0xff] %vm252, %v241
      %255 = vst.msk [vmem:[%s166 + $0x10] sm:$0xff] %vm252, %v242
      %256 = vst.msk [vmem:[%s166 + $0x18] sm:$0xff] %vm252, %v243
      %257 = vst.msk [vmem:[%s166 + $0x20] sm:$0xff] %vm252, %v244
      %258 = vst.msk [vmem:[%s166 + $0x28] sm:$0xff] %vm252, %v245
      %259 = vst.msk [vmem:[%s166 + $0x30] sm:$0xff] %vm252, %v246
      %260 = vst.msk [vmem:[%s166 + $0x38] sm:$0xff] %vm252, %v247
      %261 = vst.msk [vmem:[%s166 + $0x40] sm:$0xff] %vm252, %v248
      %262 = vst.msk [vmem:[%s166 + $0x48] sm:$0xff] %vm252, %v249
      %263 = vst.msk [vmem:[%s166 + $0x50] sm:$0xff] %vm252, %v250
      %264 = vst.msk [vmem:[%s166 + $0x58] sm:$0xff] %vm252, %v251
      %v265 = vld [vmem:[%s152] sm:$0xff]
      %v266 = vld [vmem:[%s152 + $0x8] sm:$0x7f]
      %v267 = vld [vmem:[%s152 + $0x10] sm:$0xff]
      %v268 = vld [vmem:[%s152 + $0x18] sm:$0x7f]
      %v269 = vld [vmem:[%s152 + $0x20] sm:$0xff]
      %v270 = vld [vmem:[%s152 + $0x28] sm:$0x7f]
      %v271 = vld [vmem:[%s152 + $0x30] sm:$0xff]
      %v272 = vld [vmem:[%s152 + $0x38] sm:$0x7f]
      %v273 = vld [vmem:[%s152 + $0x40] sm:$0xff]
      %v274 = vld [vmem:[%s152 + $0x48] sm:$0x7f]
      %v275 = vld [vmem:[%s152 + $0x50] sm:$0xff]
      %v276 = vld [vmem:[%s152 + $0x58] sm:$0x7f]
      %v277 = vld [vmem:[%s152 + $0x1] sm:$0xff]
      %v278 = vld [vmem:[%s152 + $0x9] sm:$0x7f]
      %v279 = vld [vmem:[%s152 + $0x11] sm:$0xff]
      %v280 = vld [vmem:[%s152 + $0x19] sm:$0x7f]
      %v281 = vld [vmem:[%s152 + $0x21] sm:$0xff]
      %v282 = vld [vmem:[%s152 + $0x29] sm:$0x7f]
      %v283 = vld [vmem:[%s152 + $0x31] sm:$0xff]
      %v284 = vld [vmem:[%s152 + $0x39] sm:$0x7f]
      %v285 = vld [vmem:[%s152 + $0x41] sm:$0xff]
      %v286 = vld [vmem:[%s152 + $0x49] sm:$0x7f]
      %v287 = vld [vmem:[%s152 + $0x51] sm:$0xff]
      %v288 = vld [vmem:[%s152 + $0x59] sm:$0x7f]
      %v289 = vsub.f32 %v265, %v277
      %v290 = vsub.f32 %v266, %v278
      %v291 = vsub.f32 %v267, %v279
      %v292 = vsub.f32 %v268, %v280
      %v293 = vsub.f32 %v269, %v281
      %v294 = vsub.f32 %v270, %v282
      %v295 = vsub.f32 %v271, %v283
      %v296 = vsub.f32 %v272, %v284
      %v297 = vsub.f32 %v273, %v285
      %v298 = vsub.f32 %v274, %v286
      %v299 = vsub.f32 %v275, %v287
      %v300 = vsub.f32 %v276, %v288
      %v301 = vand.u32 2147483647, %v289
      %v302 = vand.u32 2147483647, %v290
      %v303 = vand.u32 2147483647, %v291
      %v304 = vand.u32 2147483647, %v292
      %v305 = vand.u32 2147483647, %v293
      %v306 = vand.u32 2147483647, %v294
      %v307 = vand.u32 2147483647, %v295
      %v308 = vand.u32 2147483647, %v296
      %v309 = vand.u32 2147483647, %v297
      %v310 = vand.u32 2147483647, %v298
      %v311 = vand.u32 2147483647, %v299
      %v312 = vand.u32 2147483647, %v300
      %vm313 = vcmask 130048
      %314 = vst.msk [vmem:[%s159] sm:$0xff] %vm313, %v301
      %vm315 = vcmask 129024
      %316 = vst.msk [vmem:[%s159 + $0x8] sm:$0x7f] %vm315, %v302
      %317 = vst.msk [vmem:[%s159 + $0x10] sm:$0xff] %vm313, %v303
      %318 = vst.msk [vmem:[%s159 + $0x18] sm:$0x7f] %vm315, %v304
      %319 = vst.msk [vmem:[%s159 + $0x20] sm:$0xff] %vm313, %v305
      %320 = vst.msk [vmem:[%s159 + $0x28] sm:$0x7f] %vm315, %v306
      %321 = vst.msk [vmem:[%s159 + $0x30] sm:$0xff] %vm313, %v307
      %322 = vst.msk [vmem:[%s159 + $0x38] sm:$0x7f] %vm315, %v308
      %323 = vst.msk [vmem:[%s159 + $0x40] sm:$0xff] %vm313, %v309
      %324 = vst.msk [vmem:[%s159 + $0x48] sm:$0x7f] %vm315, %v310
      %325 = vst.msk [vmem:[%s159 + $0x50] sm:$0xff] %vm313, %v311
      %326 = vst.msk [vmem:[%s159 + $0x58] sm:$0x7f] %vm315, %v312
      %s327 = smul.u32 6, %s14
      %p328 = scmp.lt.s32.totalorder %s327, 23
      %s329 = scalar_select %p328, %s327, 23
      %s330 = smul.addr %s329, 2
      %s331 = smul.addr %s330, 8
      %s332 = scalar_lea.vmem %s1, %s331
      %s333 = smul.u32 6, %s14
      %p334 = scmp.lt.s32.totalorder %s333, 23
      %s335 = scalar_select %p334, %s333, 23
      %s336 = smul.addr %s335, 2
      %s337 = smul.addr %s336, 8
      %s338 = scalar_lea.vmem %s2, %s337
      // Predicated region
      $region25: #{tpu_custom_call.1} parent=23 // pred_check
        %p339 = pneg %p58
      $region26: #{tpu_custom_call.1} parent=23 // pred_check_branch
        %341 = sbr.rel (%p339) target = $region28
      $region27: #{tpu_custom_call.1} parent=23 // pred_region
        %s342 = smul.u32 6, %s14
      $region28: #{tpu_custom_call.1} parent=23 // pred_fallthru
        _
      // Predicated region
      $region29: #{tpu_custom_call.1} parent=23 // pred_check
        %p343 = pneg %p84
      $region30: #{tpu_custom_call.1} parent=23 // pred_check_branch
        %345 = sbr.rel (%p343) target = $region32
      $region31: #{tpu_custom_call.1} parent=23 // pred_region
        %s346 = smul.u32 6, %s14
      $region32: #{tpu_custom_call.1} parent=23 // pred_fallthru
        _
    $region24: #{tpu_custom_call.1} parent=5 // pred_fallthru
      _
    %p347 = scmp.le.s32.totalorder 2, %s9
    // Predicated region
    $region33: #{tpu_custom_call.1} parent=5 // pred_check
      %p348 = pneg %p347
    $region34: #{tpu_custom_call.1} parent=5 // pred_check_branch
      %350 = sbr.rel (%p348) target = $region36
    $region35: #{tpu_custom_call.1} parent=5 // pred_region
      %s351 = ssub.s32 %s9, 2
      // Predicated region
      $region37: #{tpu_custom_call.1} parent=35 // pred_check
        %p352 = pneg %p64
      $region38: #{tpu_custom_call.1} parent=35 // pred_check_branch
        %354 = sbr.rel (%p352) target = $region40
      $region39: #{tpu_custom_call.1} parent=35 // pred_region
        %s355 = smul.u32 6, %s15
        %p356 = scmp.lt.s32.totalorder %s355, 23
        %s357 = scalar_select %p356, %s355, 23
        %s358 = smul.addr %s357, 2
        %s359 = smul.addr %s358, 8
        %s360 = scalar_lea.vmem %s1, %s359
      $region40: #{tpu_custom_call.1} parent=35 // pred_fallthru
        _
      // Predicated region
      $region41: #{tpu_custom_call.1} parent=35 // pred_check
        %p361 = pneg %p90
      $region42: #{tpu_custom_call.1} parent=35 // pred_check_branch
        %363 = sbr.rel (%p361) target = $region44
      $region43: #{tpu_custom_call.1} parent=35 // pred_region
        %s364 = smul.u32 6, %s15
        %p365 = scmp.lt.s32.totalorder %s364, 23
        %s366 = scalar_select %p365, %s364, 23
        %s367 = smul.addr %s366, 2
        %s368 = smul.addr %s367, 8
        %s369 = scalar_lea.vmem %s2, %s368
      $region44: #{tpu_custom_call.1} parent=35 // pred_fallthru
        _
    $region36: #{tpu_custom_call.1} parent=5 // pred_fallthru
      _
  $region6: #{tpu_custom_call.1} parent=0 // loop_footer
    %s13 = sadd.s32 1, %s9
  $region7: #{tpu_custom_call.1} parent=0 // loop_footer_branch
    %8 = sbr.rel target = $region3
  $region8: #{tpu_custom_call.1} parent=0 // loop_exit
    _

</llo_original>
